<compile_context>
chip_gen: v6e
topology: v6e:2x2x1
jax: 0.10.0
libtpu: 0.0.40
codegen_flags: <defaults>
</compile_context>

<pallas_src>
import functools

import jax
import jax.numpy as jnp
from jax.experimental import pallas as pl
from jax.experimental.pallas import tpu as pltpu


def _round_up(x, m):
    return (x + m - 1) // m * m


def _vmem_ceiling():
    """~80% of the chip's per-core VMEM (conservative v7x fallback)."""
    try:
        cap = int(getattr(pltpu.get_tpu_info(), "vmem_capacity_bytes", 64 << 20))
    except Exception:
        cap = 64 << 20
    return int(cap * 0.8)


def _pick_tile_batch(B):
    """Large tiles (amortize per-grid-step overhead) but >=2 even tiles when B
    allows, so v7x's two TensorCores both get work along the 'parallel' axis."""
    if B <= 16:
        return _round_up(max(B, 1), 8)
    max_tile = 1024
    n_b = 2
    while _round_up(-(-B // n_b), 8) > max_tile:
        n_b += 2
    return _round_up(-(-B // n_b), 8)


# ---------------------------------------------------------------------------
# FUSED kernel: whole weight stack resident in VMEM; grid = (batch tiles,).
# ---------------------------------------------------------------------------
def _resnet_fused_kernel(*refs, depth):
    if depth > 0:
        x_ref, w_in_ref, b_in_ref, w_hid_ref, b_hid_ref, w_out_ref, o_ref = refs
    else:
        x_ref, w_in_ref, b_in_ref, w_out_ref, o_ref = refs

    mx = w_in_ref.dtype                               # bf16 MXU operand dtype
    h = jnp.tanh(
        jnp.dot(x_ref[...].astype(mx), w_in_ref[...],
                preferred_element_type=jnp.float32)
        + b_in_ref[...])
    # Static unroll over the (small) depth: no per-layer grid-step overhead.
    for l in range(depth):
        y = (jnp.dot(h.astype(mx), w_hid_ref[l],
                     preferred_element_type=jnp.float32)
             + b_hid_ref[l])
        h = h + jnp.tanh(y)
    o_ref[...] = jnp.dot(h.astype(mx), w_out_ref[...],
                         preferred_element_type=jnp.float32).astype(o_ref.dtype)


# ---------------------------------------------------------------------------
# STREAMED kernel: one hidden-weight slab per depth step; grid = (batch, depth).
# ---------------------------------------------------------------------------
def _resnet_streamed_kernel(x_ref, w_in_ref, b_in_ref, w_hid_ref, b_hid_ref,
                            w_out_ref, o_ref, h_ref):
    l = pl.program_id(1)
    n_l = pl.num_programs(1)
    mx = w_in_ref.dtype

    @pl.when(l == 0)
    def _():
        h_ref[...] = jnp.tanh(
            jnp.dot(x_ref[...].astype(mx), w_in_ref[...],
                    preferred_element_type=jnp.float32)
            + b_in_ref[...])

    h = h_ref[...]
    y = (jnp.dot(h.astype(mx), w_hid_ref[0],
                 preferred_element_type=jnp.float32)
         + b_hid_ref[0])
    h_ref[...] = h + jnp.tanh(y)

    @pl.when(l == n_l - 1)
    def _():
        o_ref[...] = jnp.dot(
            h_ref[...].astype(mx), w_out_ref[...],
            preferred_element_type=jnp.float32).astype(o_ref.dtype)


def resnet_forward(x, params, *, tile_batch=None, matmul_dtype=jnp.bfloat16,
                   fused_weight_bytes_limit=16 << 20):
    """Fused ResNet-MLP forward pass with a Pallas TPU kernel."""
    w_in, b_in, w_hid, b_hid, w_out = params
    B, d = x.shape
    width = w_in.shape[1]
    dd = w_out.shape[1]
    depth = int(w_hid.shape[0])

    # ---- padded, (8,128)-aligned sizes (zero padding is exact here) ----
    d_p = _round_up(d, 8)
    width_p = _round_up(width, 128)
    dd_p = _round_up(dd, 128)

    if tile_batch is None:
        tile_batch = _pick_tile_batch(B)
    assert tile_batch % 8 == 0, "tile_batch must be a multiple of 8"
    B_p = _round_up(B, tile_batch)
    n_b = B_p // tile_batch

    # ---- pad + pre-cast parameters ----
    f32 = jnp.float32
    x_p = jnp.pad(x, ((0, B_p - B), (0, d_p - d)))
    w_in_p = jnp.pad(w_in, ((0, d_p - d), (0, width_p - width))).astype(matmul_dtype)
    b_in_p = jnp.pad(b_in.reshape(1, width), ((0, 0), (0, width_p - width))).astype(f32)
    w_out_p = jnp.pad(w_out, ((0, width_p - width), (0, dd_p - dd))).astype(matmul_dtype)
    if depth > 0:
        w_hid_p = jnp.pad(
            w_hid, ((0, 0), (0, width_p - width), (0, width_p - width))
        ).astype(matmul_dtype)
        b_hid_p = jnp.pad(
            b_hid.reshape(depth, 1, width), ((0, 0), (0, 0), (0, width_p - width))
        ).astype(f32)

    itm = jnp.dtype(matmul_dtype).itemsize
    vmem_ceiling = _vmem_ceiling()

    # Resident-weight footprint (single-buffered) + activation / temp estimate.
    weight_bytes = (d_p * width_p * itm + width_p * 4
                    + depth * width_p * width_p * itm + depth * width_p * 4
                    + width_p * dd_p * itm)
    act_bytes = 2 * tile_batch * d_p * 4 + 2 * tile_batch * dd_p * 4
    tmp_bytes = 4 * tile_batch * width_p * 4          # h / y / tanh temporaries
    fused_bytes = weight_bytes + act_bytes + tmp_bytes

    use_fused = (depth == 0) or (
        weight_bytes <= fused_weight_bytes_limit
        and fused_bytes + (2 << 20) <= vmem_ceiling)

    flops = 2 * B_p * (d_p * width_p + depth * width_p * width_p + width_p * dd_p)
    cost = pl.CostEstimate(
        flops=flops,
        transcendentals=B_p * width_p * (depth + 1),
        bytes_accessed=B_p * d_p * 4 + weight_bytes + B_p * dd_p * 4,
    )
    out_shape = jax.ShapeDtypeStruct((B_p, dd_p), x.dtype)
    out_spec_batch_only = pl.BlockSpec((tile_batch, dd_p), lambda i: (i, 0))

    if use_fused:
        # Grid-invariant (weight) operands: single buffer, saves VMEM.
        def resident(shape, idx):
            return pl.BlockSpec(shape, idx, pipeline_mode=pl.Buffered(1))

        in_specs = [
            pl.BlockSpec((tile_batch, d_p), lambda i: (i, 0)),      # x
            resident((d_p, width_p), lambda i: (0, 0)),             # W_in
            resident((1, width_p), lambda i: (0, 0)),               # b_in
        ]
        args = [x_p, w_in_p, b_in_p]
        if depth > 0:
            in_specs += [
                resident((depth, width_p, width_p), lambda i: (0, 0, 0)),  # W_hid stack
                resident((depth, 1, width_p), lambda i: (0, 0, 0)),        # b_hid stack
            ]
            args += [w_hid_p, b_hid_p]
        in_specs.append(resident((width_p, dd_p), lambda i: (0, 0)))       # W_out
        args.append(w_out_p)

        vmem_limit = int(min(vmem_ceiling, max(fused_bytes + (2 << 20), 32 << 20)))

        out_p = pl.pallas_call(
            functools.partial(_resnet_fused_kernel, depth=depth),
            out_shape=out_shape,
            grid_spec=pltpu.PrefetchScalarGridSpec(
                num_scalar_prefetch=0,
                grid=(n_b,),
                in_specs=in_specs,
                out_specs=out_spec_batch_only,
            ),
            compiler_params=pltpu.CompilerParams(
                dimension_semantics=("parallel",),
                vmem_limit_bytes=vmem_limit,
            ),
            cost_estimate=cost,
        )(*args)
    else:
        # Streamed-slab variant for large width*depth (depth > 0 guaranteed).
        stream_bytes = (
            tile_batch * d_p * 4                   # x (single-buffered)
            + d_p * width_p * itm + width_p * 4    # W_in, b_in (single)
            + 3 * width_p * width_p * itm          # W_hid slab, 3-deep
            + 3 * width_p * 4                      # b_hid slab, 3-deep
            + width_p * dd_p * itm                 # W_out (single)
            + 2 * tile_batch * dd_p * 4            # out (double)
            + tile_batch * width_p * 4             # h scratch
            + 3 * tile_batch * width_p * 4         # temporaries
        )
        vmem_limit = int(min(vmem_ceiling, max(stream_bytes + (2 << 20), 32 << 20)))

        out_p = pl.pallas_call(
            _resnet_streamed_kernel,
            out_shape=out_shape,
            grid_spec=pltpu.PrefetchScalarGridSpec(
                num_scalar_prefetch=0,
                grid=(n_b, depth),
                in_specs=[
                    pl.BlockSpec((tile_batch, d_p), lambda i, l: (i, 0),
                                 pipeline_mode=pl.Buffered(1)),              # x
                    pl.BlockSpec((d_p, width_p), lambda i, l: (0, 0),
                                 pipeline_mode=pl.Buffered(1)),              # W_in
                    pl.BlockSpec((1, width_p), lambda i, l: (0, 0),
                                 pipeline_mode=pl.Buffered(1)),              # b_in
                    pl.BlockSpec((1, width_p, width_p), lambda i, l: (l, 0, 0),
                                 pipeline_mode=pl.Buffered(3)),              # W_hid[l]
                    pl.BlockSpec((1, 1, width_p), lambda i, l: (l, 0, 0),
                                 pipeline_mode=pl.Buffered(3)),              # b_hid[l]
                    pl.BlockSpec((width_p, dd_p), lambda i, l: (0, 0),
                                 pipeline_mode=pl.Buffered(1)),              # W_out
                ],
                out_specs=pl.BlockSpec((tile_batch, dd_p), lambda i, l: (i, 0)),
                scratch_shapes=[pltpu.VMEM((tile_batch, width_p), jnp.float32)],
            ),
            compiler_params=pltpu.CompilerParams(
                dimension_semantics=("parallel", "arbitrary"),
                vmem_limit_bytes=vmem_limit,
            ),
            cost_estimate=cost,
        )(x_p, w_in_p, b_in_p, w_hid_p, b_hid_p, w_out_p)

    return out_p[:B, :dd]


def init_params(key, d, dd, width, depth, dtype=jnp.float32):
    """Deterministic synthetic parameters (PyTorch-Linear-like init),
    already transposed to (in_features, out_features)."""
    ks = jax.random.split(key, 2 * max(depth, 1) + 3)

    def uniform(k, shape, fan_in):
        bound = 1.0 / (fan_in ** 0.5)
        return jax.random.uniform(k, shape, dtype, minval=-bound, maxval=bound)

    w_in = uniform(ks[0], (d, width), d)
    b_in = uniform(ks[1], (1, width), d)
    if depth > 0:
        w_hid = jnp.stack(
            [uniform(ks[2 + i], (width, width), width) for i in range(depth)])
        b_hid = jnp.stack(
            [uniform(ks[2 + depth + i], (1, width), width) for i in range(depth)])
    else:
        w_hid = jnp.zeros((0, width, width), dtype)
        b_hid = jnp.zeros((0, 1, width), dtype)
    w_out = uniform(ks[2 + 2 * depth], (width, dd), width)
    return w_in, b_in, w_hid, b_hid, w_out


def resnet_reference(x, params, *, matmul_dtype=jnp.bfloat16):
    """Plain-JAX reference mirroring the kernel's mixed precision
    (bf16 operands, f32 accumulation, f32 bias/tanh/residual)."""
    w_in, b_in, w_hid, b_hid, w_out = params

    def mm(a, b):
        return jnp.dot(a.astype(matmul_dtype), b.astype(matmul_dtype),
                       preferred_element_type=jnp.float32)

    h = jnp.tanh(mm(x, w_in) + b_in)
    for layer in range(w_hid.shape[0]):
        h = h + jnp.tanh(mm(h, w_hid[layer]) + b_hid[layer].reshape(1, -1))
    return mm(h, w_out).astype(x.dtype)


if __name__ == "__main__":
    # Small shapes consistent with the ResNet blocks inside GnnV5
    # (n_hiddens ~ width; m_depth/v_depth = 2-3 -> depth=3).
    d, dd, width, depth = 4, 2, 32, 3
    batch = 256

    key = jax.random.PRNGKey(0)
    k_x, k_p = jax.random.split(key)
    x = jax.random.normal(k_x, (batch, d), dtype=jnp.float32)
    params = init_params(k_p, d, dd, width, depth)
    ref = resnet_reference(x, params)

    # Default (fused, weights-resident) path.
    out = jax.block_until_ready(resnet_forward(x, params))
    assert out.shape == (batch, dd)
    max_err = float(jnp.max(jnp.abs(out - ref)))
    assert jnp.allclose(out, ref, atol=5e-3, rtol=5e-3), (
        f"fused mismatch vs reference (max abs err {max_err})")

    # Streamed-slab path (forced) — exercised to keep the large-width variant honest.
    out_s = jax.block_until_ready(
        resnet_forward(x, params, fused_weight_bytes_limit=0))
    max_err_s = float(jnp.max(jnp.abs(out_s - ref)))
    assert jnp.allclose(out_s, ref, atol=5e-3, rtol=5e-3), (
        f"streamed mismatch vs reference (max abs err {max_err_s})")

    print("KERNEL_OK")
</pallas_src>

<mosaic_0001>
module attributes {stable_mosaic.version = 11 : i64} {
  func.func @_resnet_fused_kernel(%arg0: i32, %arg1: memref<128x8xf32, #tpu.memory_space<vmem>>, %arg2: memref<8x128xbf16, #tpu.memory_space<vmem>>, %arg3: memref<1x128xf32, #tpu.memory_space<vmem>>, %arg4: memref<3x128x128xbf16, #tpu.memory_space<vmem>>, %arg5: memref<3x1x128xf32, #tpu.memory_space<vmem>>, %arg6: memref<128x128xbf16, #tpu.memory_space<vmem>>, %arg7: memref<128x128xf32, #tpu.memory_space<vmem>>) attributes {dimension_semantics = [#tpu.dimension_semantics<parallel>], iteration_bounds = array<i64: 2>, scalar_prefetch = 0 : i64, scratch_operands = 0 : i64, tpu.core_type = #tpu.core_type<tc>, window_params = [{transform_indices = @transform_0, window_bounds = array<i64: 128, 8>}, {pipeline_mode = #tpu.pipeline_mode<synchronous>, transform_indices = @transform_1, window_bounds = array<i64: 8, 128>}, {pipeline_mode = #tpu.pipeline_mode<synchronous>, transform_indices = @transform_2, window_bounds = array<i64: 1, 128>}, {pipeline_mode = #tpu.pipeline_mode<synchronous>, transform_indices = @transform_3, window_bounds = array<i64: 3, 128, 128>}, {pipeline_mode = #tpu.pipeline_mode<synchronous>, transform_indices = @transform_4, window_bounds = array<i64: 3, 1, 128>}, {pipeline_mode = #tpu.pipeline_mode<synchronous>, transform_indices = @transform_5, window_bounds = array<i64: 128, 128>}, {transform_indices = @transform_6, window_bounds = array<i64: 128, 128>}]} {
    %c0 = arith.constant 0 : index
    %c0_0 = arith.constant 0 : index
    %0 = vector.load %arg1[%c0, %c0_0] : memref<128x8xf32, #tpu.memory_space<vmem>>, vector<128x8xf32>
    %1 = arith.truncf %0 : vector<128x8xf32> to vector<128x8xbf16>
    %c0_1 = arith.constant 0 : index
    %c0_2 = arith.constant 0 : index
    %2 = vector.load %arg2[%c0_1, %c0_2] : memref<8x128xbf16, #tpu.memory_space<vmem>>, vector<8x128xbf16>
    %cst = arith.constant dense<0.000000e+00> : vector<128x128xf32>
    %3 = tpu.matmul %1, %2, %cst {dimension_numbers = #tpu.dot_dimension_numbers<[1], [0], [0], [1], [0, 0, 1, 1], [], []>} : vector<128x8xbf16>, vector<8x128xbf16>, vector<128x128xf32> -> vector<128x128xf32>
    %c0_3 = arith.constant 0 : index
    %c0_4 = arith.constant 0 : index
    %4 = vector.load %arg3[%c0_3, %c0_4] : memref<1x128xf32, #tpu.memory_space<vmem>>, vector<1x128xf32>
    %5 = vector.broadcast %4 : vector<1x128xf32> to vector<128x128xf32>
    %6 = arith.addf %3, %5 : vector<128x128xf32>
    %7 = math.tanh %6 : vector<128x128xf32>
    %8 = arith.truncf %7 : vector<128x128xf32> to vector<128x128xbf16>
    %c0_5 = arith.constant 0 : index
    %c0_6 = arith.constant 0 : index
    %c0_7 = arith.constant 0 : index
    %9 = vector.load %arg4[%c0_5, %c0_6, %c0_7] : memref<3x128x128xbf16, #tpu.memory_space<vmem>>, vector<1x128x128xbf16>
    %10 = vector.shape_cast %9 : vector<1x128x128xbf16> to vector<128x128xbf16>
    %cst_8 = arith.constant dense<0.000000e+00> : vector<128x128xf32>
    %11 = tpu.matmul %8, %10, %cst_8 {dimension_numbers = #tpu.dot_dimension_numbers<[1], [0], [0], [1], [0, 0, 1, 1], [], []>} : vector<128x128xbf16>, vector<128x128xbf16>, vector<128x128xf32> -> vector<128x128xf32>
    %c0_9 = arith.constant 0 : index
    %c0_10 = arith.constant 0 : index
    %c0_11 = arith.constant 0 : index
    %12 = vector.load %arg5[%c0_9, %c0_10, %c0_11] : memref<3x1x128xf32, #tpu.memory_space<vmem>>, vector<1x1x128xf32>
    %13 = vector.shape_cast %12 : vector<1x1x128xf32> to vector<1x128xf32>
    %14 = vector.broadcast %13 : vector<1x128xf32> to vector<128x128xf32>
    %15 = arith.addf %11, %14 : vector<128x128xf32>
    %16 = math.tanh %15 : vector<128x128xf32>
    %17 = arith.addf %7, %16 : vector<128x128xf32>
    %18 = arith.truncf %17 : vector<128x128xf32> to vector<128x128xbf16>
    %c1 = arith.constant 1 : index
    %c0_12 = arith.constant 0 : index
    %c0_13 = arith.constant 0 : index
    %19 = vector.load %arg4[%c1, %c0_12, %c0_13] : memref<3x128x128xbf16, #tpu.memory_space<vmem>>, vector<1x128x128xbf16>
    %20 = vector.shape_cast %19 : vector<1x128x128xbf16> to vector<128x128xbf16>
    %cst_14 = arith.constant dense<0.000000e+00> : vector<128x128xf32>
    %21 = tpu.matmul %18, %20, %cst_14 {dimension_numbers = #tpu.dot_dimension_numbers<[1], [0], [0], [1], [0, 0, 1, 1], [], []>} : vector<128x128xbf16>, vector<128x128xbf16>, vector<128x128xf32> -> vector<128x128xf32>
    %c1_15 = arith.constant 1 : index
    %c0_16 = arith.constant 0 : index
    %c0_17 = arith.constant 0 : index
    %22 = vector.load %arg5[%c1_15, %c0_16, %c0_17] : memref<3x1x128xf32, #tpu.memory_space<vmem>>, vector<1x1x128xf32>
    %23 = vector.shape_cast %22 : vector<1x1x128xf32> to vector<1x128xf32>
    %24 = vector.broadcast %23 : vector<1x128xf32> to vector<128x128xf32>
    %25 = arith.addf %21, %24 : vector<128x128xf32>
    %26 = math.tanh %25 : vector<128x128xf32>
    %27 = arith.addf %17, %26 : vector<128x128xf32>
    %28 = arith.truncf %27 : vector<128x128xf32> to vector<128x128xbf16>
    %c2 = arith.constant 2 : index
    %c0_18 = arith.constant 0 : index
    %c0_19 = arith.constant 0 : index
    %29 = vector.load %arg4[%c2, %c0_18, %c0_19] : memref<3x128x128xbf16, #tpu.memory_space<vmem>>, vector<1x128x128xbf16>
    %30 = vector.shape_cast %29 : vector<1x128x128xbf16> to vector<128x128xbf16>
    %cst_20 = arith.constant dense<0.000000e+00> : vector<128x128xf32>
    %31 = tpu.matmul %28, %30, %cst_20 {dimension_numbers = #tpu.dot_dimension_numbers<[1], [0], [0], [1], [0, 0, 1, 1], [], []>} : vector<128x128xbf16>, vector<128x128xbf16>, vector<128x128xf32> -> vector<128x128xf32>
    %c2_21 = arith.constant 2 : index
    %c0_22 = arith.constant 0 : index
    %c0_23 = arith.constant 0 : index
    %32 = vector.load %arg5[%c2_21, %c0_22, %c0_23] : memref<3x1x128xf32, #tpu.memory_space<vmem>>, vector<1x1x128xf32>
    %33 = vector.shape_cast %32 : vector<1x1x128xf32> to vector<1x128xf32>
    %34 = vector.broadcast %33 : vector<1x128xf32> to vector<128x128xf32>
    %35 = arith.addf %31, %34 : vector<128x128xf32>
    %36 = math.tanh %35 : vector<128x128xf32>
    %37 = arith.addf %27, %36 : vector<128x128xf32>
    %38 = arith.truncf %37 : vector<128x128xf32> to vector<128x128xbf16>
    %c0_24 = arith.constant 0 : index
    %c0_25 = arith.constant 0 : index
    %39 = vector.load %arg6[%c0_24, %c0_25] : memref<128x128xbf16, #tpu.memory_space<vmem>>, vector<128x128xbf16>
    %cst_26 = arith.constant dense<0.000000e+00> : vector<128x128xf32>
    %40 = tpu.matmul %38, %39, %cst_26 {dimension_numbers = #tpu.dot_dimension_numbers<[1], [0], [0], [1], [0, 0, 1, 1], [], []>} : vector<128x128xbf16>, vector<128x128xbf16>, vector<128x128xf32> -> vector<128x128xf32>
    %c0_27 = arith.constant 0 : index
    %c0_28 = arith.constant 0 : index
    %41 = vector.load %arg7[%c0_27, %c0_28] : memref<128x128xf32, #tpu.memory_space<vmem>>, vector<128x128xf32>
    tpu.vector_store %arg7[%c0_27, %c0_28], %40 {strides = array<i32>} : memref<128x128xf32, #tpu.memory_space<vmem>>, vector<128x128xf32>,
    return
  }
  func.func @transform_0(%arg0: i32) -> (i32, i32) {
    %c0_i32 = arith.constant 0 : i32
    %c0_i32_0 = arith.constant 0 : i32
    return %arg0, %c0_i32 : i32, i32
  }
  func.func @transform_1(%arg0: i32) -> (i32, i32) {
    %c0_i32 = arith.constant 0 : i32
    %c0_i32_0 = arith.constant 0 : i32
    %c0_i32_1 = arith.constant 0 : i32
    return %c0_i32, %c0_i32_0 : i32, i32
  }
  func.func @transform_2(%arg0: i32) -> (i32, i32) {
    %c0_i32 = arith.constant 0 : i32
    %c0_i32_0 = arith.constant 0 : i32
    %c0_i32_1 = arith.constant 0 : i32
    return %c0_i32, %c0_i32_0 : i32, i32
  }
  func.func @transform_3(%arg0: i32) -> (i32, i32, i32) {
    %c0_i32 = arith.constant 0 : i32
    %c0_i32_0 = arith.constant 0 : i32
    %c0_i32_1 = arith.constant 0 : i32
    %c0_i32_2 = arith.constant 0 : i32
    return %c0_i32, %c0_i32_0, %c0_i32_1 : i32, i32, i32
  }
  func.func @transform_4(%arg0: i32) -> (i32, i32, i32) {
    %c0_i32 = arith.constant 0 : i32
    %c0_i32_0 = arith.constant 0 : i32
    %c0_i32_1 = arith.constant 0 : i32
    %c0_i32_2 = arith.constant 0 : i32
    return %c0_i32, %c0_i32_0, %c0_i32_1 : i32, i32, i32
  }
  func.func @transform_5(%arg0: i32) -> (i32, i32) {
    %c0_i32 = arith.constant 0 : i32
    %c0_i32_0 = arith.constant 0 : i32
    %c0_i32_1 = arith.constant 0 : i32
    return %c0_i32, %c0_i32_0 : i32, i32
  }
  func.func @transform_6(%arg0: i32) -> (i32, i32) {
    %c0_i32 = arith.constant 0 : i32
    %c0_i32_0 = arith.constant 0 : i32
    return %arg0, %c0_i32 : i32, i32
  }
}

</mosaic_0001>

<llo_original>
// kernel: tpu_custom_call.1
$region0: #{tpu_custom_call.1}
  #allocation0 [shape = 'u32[]', space=smem, size = 0x4, offset = 0x4, fixed_abs, tag = 'smem constant byte address 0x4 - core index']
  #allocation1 [shape = 'u32[144,128]{1,0:T(1,128)}', space=vmem, size = 0x12000, scoped, tag = 'internal scratch']
  %s0 = inlined_call_operand.vmem [shape: f32[256,8], index: 0, kind: input, shape index: {}]
  %s1 = inlined_call_operand.vmem [shape: bf16[8,128], index: 1, kind: input, shape index: {}]
  %s2 = inlined_call_operand.vmem [shape: f32[1,128], index: 2, kind: input, shape index: {}]
  %s3 = inlined_call_operand.vmem [shape: bf16[3,128,128], index: 3, kind: input, shape index: {}]
  %s4 = inlined_call_operand.vmem [shape: f32[3,1,128], index: 4, kind: input, shape index: {}]
  %s5 = inlined_call_operand.vmem [shape: bf16[128,128], index: 5, kind: input, shape index: {}]
  %s6 = inlined_call_operand.hbm [shape: f32[256,128], index: 6, kind: output, shape index: {}]
  %s7 = sld [smem:[#allocation0]]
  $region57: #{tpu_custom_call.1} parent=0
    _
  %s9 = ssub.s32 1, %s7
  %s10 = scalar_select 0, %s9, %s7
  $region1: #{tpu_custom_call.1} parent=0
    #allocation2 [shape = 'u8[131072]{0}', space=vmem, size = 0x20000, scoped, tag = 'output window, operand 0']
    #allocation3 [shape = 's32[2]{0}', space=sflag, size = 0x8, scoped, tag = 'scoped memory for tpu_custom_call.1']
    %11 = vsyncpa [#allocation3], 0
    %s12 = scalar_lea.sflag [#allocation3], 1
    %13 = vsyncpa %s12, 0
    loop: start=0, step=1, limit=4
    $region2: #{tpu_custom_call.1} parent=1 // loop_pre_header
      _
    $region3: #{tpu_custom_call.1} parent=1 // loop_header
      %s15 = sphi 0, %s19
      %p16 = scmp.ge.s32.totalorder %s15, 4
      %s25 = sphi 0, %s27
      %s28 = sphi 0, %s25
      %s29 = sphi 0, %s28
      %s45 = sphi 0, %s29
      %s49 = sphi 0, %s49
      %s51 = sphi 0, %s49
      %s52 = sphi 0, %s51
      %s66 = sphi 0, %s52
      %s70 = sphi 0, %s70
      %s72 = sphi 0, %s70
      %s73 = sphi 0, %s72
      %s87 = sphi 0, %s73
      %s91 = sphi 0, %s91
      %s93 = sphi 0, %s91
      %s94 = sphi 0, %s93
      %s108 = sphi 0, %s94
      %s112 = sphi 0, %s112
      %s114 = sphi 0, %s112
      %s115 = sphi 0, %s114
      %s129 = sphi 0, %s115
      %s133 = sphi 0, %s133
      %s135 = sphi 0, %s133
      %s136 = sphi 0, %s135
      %s150 = sphi 0, %s136
      %s156 = sphi 0, %s158
      %s159 = sphi 0, %s156
      %s160 = sphi 0, %s159
      %s176 = sphi 0, %s160
    $region4: #{tpu_custom_call.1} parent=1 // loop_header_branch
      %18 = sbr.rel (%p16) target = $region8
    $region5: #{tpu_custom_call.1} parent=1 // loop_body
      %s20 = ssub.s32 %s15, 1
      %s21 = ssub.s32 %s15, 2
      %s22 = sadd.s32 %s15, 1
      %s23 = ssub.s32 %s15, %s22
      %p24 = scmp.eq.s32.totalorder %s23, 0
      %s26 = sadd.s32 %s25, 1
      %s27 = scalar_select %p24, %s25, %s26
      %p30 = pneg %p24
      %p31 = scmp.eq.s32.totalorder %s15, 1
      %p32 = por %p30, %p31
      %p33 = scmp.ne.s32.totalorder %s25, %s28
      %p34 = scmp.eq.s32.totalorder %s15, 0
      %p35 = por %p33, %p34
      %p36 = scmp.ne.s32.totalorder %s25, %s28
      %p37 = scmp.eq.s32.totalorder %s20, 1
      %p38 = por %p36, %p37
      %p39 = scmp.ne.s32.totalorder %s28, %s29
      %p40 = scmp.eq.s32.totalorder %s20, 0
      %p41 = por %p39, %p40
      %p42 = scmp.ne.s32.totalorder %s28, %s29
      %p43 = scmp.eq.s32.totalorder %s21, 1
      %p44 = por %p42, %p43
      %p46 = scmp.ne.s32.totalorder %s29, %s45
      %p47 = scmp.eq.s32.totalorder %s21, 0
      %p48 = por %p46, %p47
      %s50 = sadd.s32 %s49, 1
      %p53 = scmp.eq.s32.totalorder %s15, 1
      %p54 = scmp.ne.s32.totalorder %s49, %s51
      %p55 = scmp.eq.s32.totalorder %s15, 0
      %p56 = por %p54, %p55
      %p57 = scmp.ne.s32.totalorder %s49, %s51
      %p58 = scmp.eq.s32.totalorder %s20, 1
      %p59 = por %p57, %p58
      %p60 = scmp.ne.s32.totalorder %s51, %s52
      %p61 = scmp.eq.s32.totalorder %s20, 0
      %p62 = por %p60, %p61
      %p63 = scmp.ne.s32.totalorder %s51, %s52
      %p64 = scmp.eq.s32.totalorder %s21, 1
      %p65 = por %p63, %p64
      %p67 = scmp.ne.s32.totalorder %s52, %s66
      %p68 = scmp.eq.s32.totalorder %s21, 0
      %p69 = por %p67, %p68
      %s71 = sadd.s32 %s70, 1
      %p74 = scmp.eq.s32.totalorder %s15, 1
      %p75 = scmp.ne.s32.totalorder %s70, %s72
      %p76 = scmp.eq.s32.totalorder %s15, 0
      %p77 = por %p75, %p76
      %p78 = scmp.ne.s32.totalorder %s70, %s72
      %p79 = scmp.eq.s32.totalorder %s20, 1
      %p80 = por %p78, %p79
      %p81 = scmp.ne.s32.totalorder %s72, %s73
      %p82 = scmp.eq.s32.totalorder %s20, 0
      %p83 = por %p81, %p82
      %p84 = scmp.ne.s32.totalorder %s72, %s73
      %p85 = scmp.eq.s32.totalorder %s21, 1
      %p86 = por %p84, %p85
      %p88 = scmp.ne.s32.totalorder %s73, %s87
      %p89 = scmp.eq.s32.totalorder %s21, 0
      %p90 = por %p88, %p89
      %s92 = sadd.s32 %s91, 1
      %p95 = scmp.eq.s32.totalorder %s15, 1
      %p96 = scmp.ne.s32.totalorder %s91, %s93
      %p97 = scmp.eq.s32.totalorder %s15, 0
      %p98 = por %p96, %p97
      %p99 = scmp.ne.s32.totalorder %s91, %s93
      %p100 = scmp.eq.s32.totalorder %s20, 1
      %p101 = por %p99, %p100
      %p102 = scmp.ne.s32.totalorder %s93, %s94
      %p103 = scmp.eq.s32.totalorder %s20, 0
      %p104 = por %p102, %p103
      %p105 = scmp.ne.s32.totalorder %s93, %s94
      %p106 = scmp.eq.s32.totalorder %s21, 1
      %p107 = por %p105, %p106
      %p109 = scmp.ne.s32.totalorder %s94, %s108
      %p110 = scmp.eq.s32.totalorder %s21, 0
      %p111 = por %p109, %p110
      %s113 = sadd.s32 %s112, 1
      %p116 = scmp.eq.s32.totalorder %s15, 1
      %p117 = scmp.ne.s32.totalorder %s112, %s114
      %p118 = scmp.eq.s32.totalorder %s15, 0
      %p119 = por %p117, %p118
      %p120 = scmp.ne.s32.totalorder %s112, %s114
      %p121 = scmp.eq.s32.totalorder %s20, 1
      %p122 = por %p120, %p121
      %p123 = scmp.ne.s32.totalorder %s114, %s115
      %p124 = scmp.eq.s32.totalorder %s20, 0
      %p125 = por %p123, %p124
      %p126 = scmp.ne.s32.totalorder %s114, %s115
      %p127 = scmp.eq.s32.totalorder %s21, 1
      %p128 = por %p126, %p127
      %p130 = scmp.ne.s32.totalorder %s115, %s129
      %p131 = scmp.eq.s32.totalorder %s21, 0
      %p132 = por %p130, %p131
      %s134 = sadd.s32 %s133, 1
      %p137 = scmp.eq.s32.totalorder %s15, 1
      %p138 = scmp.ne.s32.totalorder %s133, %s135
      %p139 = scmp.eq.s32.totalorder %s15, 0
      %p140 = por %p138, %p139
      %p141 = scmp.ne.s32.totalorder %s133, %s135
      %p142 = scmp.eq.s32.totalorder %s20, 1
      %p143 = por %p141, %p142
      %p144 = scmp.ne.s32.totalorder %s135, %s136
      %p145 = scmp.eq.s32.totalorder %s20, 0
      %p146 = por %p144, %p145
      %p147 = scmp.ne.s32.totalorder %s135, %s136
      %p148 = scmp.eq.s32.totalorder %s21, 1
      %p149 = por %p147, %p148
      %p151 = scmp.ne.s32.totalorder %s136, %s150
      %p152 = scmp.eq.s32.totalorder %s21, 0
      %p153 = por %p151, %p152
      %s154 = ssub.s32 %s15, %s22
      %p155 = scmp.eq.s32.totalorder %s154, 0
      %s157 = sadd.s32 %s156, 1
      %s158 = scalar_select %p155, %s156, %s157
      %p161 = pneg %p155
      %p162 = scmp.eq.s32.totalorder %s15, 1
      %p163 = por %p161, %p162
      %p164 = scmp.ne.s32.totalorder %s156, %s159
      %p165 = scmp.eq.s32.totalorder %s15, 0
      %p166 = por %p164, %p165
      %p167 = scmp.ne.s32.totalorder %s156, %s159
      %p168 = scmp.eq.s32.totalorder %s20, 1
      %p169 = por %p167, %p168
      %p170 = scmp.ne.s32.totalorder %s159, %s160
      %p171 = scmp.eq.s32.totalorder %s20, 0
      %p172 = por %p170, %p171
      %p173 = scmp.ne.s32.totalorder %s159, %s160
      %p174 = scmp.eq.s32.totalorder %s21, 1
      %p175 = por %p173, %p174
      %p177 = scmp.ne.s32.totalorder %s160, %s176
      %p178 = scmp.eq.s32.totalorder %s21, 0
      %p179 = por %p177, %p178
      %p180 = scmp.le.s32.totalorder 1, %s15
      %p181 = scmp.lt.s32.totalorder %s15, 3
      %p182 = pnand %p180, %p181
      %p183 = pneg %p182
      // Predicated region
      $region9: #{tpu_custom_call.1} parent=5 // pred_check
        _
      $region10: #{tpu_custom_call.1} parent=5 // pred_check_branch
        %185 = sbr.rel (%p182) target = $region12
      $region11: #{tpu_custom_call.1} parent=5 // pred_region
        %s186 = ssub.s32 %s15, 1
        // Predicated region
        $region13: #{tpu_custom_call.1} parent=11 // pred_check
          %p187 = pneg %p62
        $region14: #{tpu_custom_call.1} parent=11 // pred_check_branch
          %189 = sbr.rel (%p187) target = $region16
        $region15: #{tpu_custom_call.1} parent=11 // pred_region
          _
        $region16: #{tpu_custom_call.1} parent=11 // pred_fallthru
          _
        // Predicated region
        $region17: #{tpu_custom_call.1} parent=11 // pred_check
          %p190 = pneg %p83
        $region18: #{tpu_custom_call.1} parent=11 // pred_check_branch
          %192 = sbr.rel (%p190) target = $region20
        $region19: #{tpu_custom_call.1} parent=11 // pred_region
          _
        $region20: #{tpu_custom_call.1} parent=11 // pred_fallthru
          _
        // Predicated region
        $region21: #{tpu_custom_call.1} parent=11 // pred_check
          %p193 = pneg %p104
        $region22: #{tpu_custom_call.1} parent=11 // pred_check_branch
          %195 = sbr.rel (%p193) target = $region24
        $region23: #{tpu_custom_call.1} parent=11 // pred_region
          _
        $region24: #{tpu_custom_call.1} parent=11 // pred_fallthru
          _
        // Predicated region
        $region25: #{tpu_custom_call.1} parent=11 // pred_check
          %p196 = pneg %p125
        $region26: #{tpu_custom_call.1} parent=11 // pred_check_branch
          %198 = sbr.rel (%p196) target = $region28
        $region27: #{tpu_custom_call.1} parent=11 // pred_region
          _
        $region28: #{tpu_custom_call.1} parent=11 // pred_fallthru
          _
        // Predicated region
        $region29: #{tpu_custom_call.1} parent=11 // pred_check
          %p199 = pneg %p146
        $region30: #{tpu_custom_call.1} parent=11 // pred_check_branch
          %201 = sbr.rel (%p199) target = $region32
        $region31: #{tpu_custom_call.1} parent=11 // pred_region
          _
        $region32: #{tpu_custom_call.1} parent=11 // pred_fallthru
          _
      $region12: #{tpu_custom_call.1} parent=5 // pred_fallthru
        _
      %p202 = scmp.lt.s32.totalorder %s15, 2
      // Predicated region
      $region33: #{tpu_custom_call.1} parent=5 // pred_check
        %p203 = pneg %p202
      $region34: #{tpu_custom_call.1} parent=5 // pred_check_branch
        %205 = sbr.rel (%p203) target = $region36
      $region35: #{tpu_custom_call.1} parent=5 // pred_region
        // Predicated region
        $region37: #{tpu_custom_call.1} parent=35 // pred_check
          %p206 = pneg %p35
        $region38: #{tpu_custom_call.1} parent=35 // pred_check_branch
          %208 = sbr.rel (%p206) target = $region40
        $region39: #{tpu_custom_call.1} parent=35 // pred_region
          %s209 = smul.u32 16, %s15
          %p210 = scmp.lt.s32.totalorder %s209, 31
          %s211 = scalar_select %p210, %s209, 31
          %s212 = smul.addr %s211, 8
          %s213 = scalar_lea.vmem %s0, %s212
          %s214 = smul.u32 16, %s15
        $region40: #{tpu_custom_call.1} parent=35 // pred_fallthru
          _
      $region36: #{tpu_custom_call.1} parent=5 // pred_fallthru
        _
      %p215 = scmp.le.s32.totalorder 1, %s15
      %p216 = scmp.lt.s32.totalorder %s15, 3
      %p217 = pnand %p215, %p216
      %p218 = pneg %p217
      // Predicated region
      $region41: #{tpu_custom_call.1} parent=5 // pred_check
        _
      $region42: #{tpu_custom_call.1} parent=5 // pred_check_branch
        %220 = sbr.rel (%p217) target = $region44
      $region43: #{tpu_custom_call.1} parent=5 // pred_region
        %s221 = ssub.s32 %s15, 1
        %s222 = smul.u32 16, %s20
        %p223 = scmp.lt.s32.totalorder %s222, 31
        %s224 = scalar_select %p223, %s222, 31
        %s225 = smul.addr %s224, 8
        %s226 = scalar_lea.vmem %s0, %s225
        %p227 = pneg %p41
        %p228 = pneg %p38
        %p229 = pneg %p62
        %p230 = pneg %p59
        %p231 = pneg %p83
        %p232 = pneg %p80
        %p233 = pneg %p104
        %p234 = pneg %p101
        %p235 = pneg %p125
        %p236 = pneg %p122
        %p237 = pneg %p146
        %p238 = pneg %p143
        %p239 = pneg %p172
        %p240 = pneg %p169
        %s241 = sand.u32 %s159, 1
        %s242 = scalar_lea.sflag [#allocation3], %s241
        %s243 = sand.u32 %s159, 1
        %s244 = smul.addr %s243, 128
        %s245 = scalar_lea.vmem [#allocation2], %s244
        %s246 = smul.u32 16, %s20
        %p247 = scmp.lt.s32.totalorder %s246, 31
        %s248 = scalar_select %p247, %s246, 31
        %s249 = smul.addr %s248, 8
        %s250 = scalar_lea.vmem %s0, %s249
        %s251 = smul.u32 16, %s20
        %s252 = smul.u32 16, %s20
        %v254 = vld [vmem:[%s250] sm:$0xff]
        %v255 = vld [vmem:[%s250 + $0x8] sm:$0xff]
        %v256 = vld [vmem:[%s250 + $0x10] sm:$0xff]
        %v257 = vld [vmem:[%s250 + $0x18] sm:$0xff]
        %v258 = vld [vmem:[%s250 + $0x20] sm:$0xff]
        %v259 = vld [vmem:[%s250 + $0x28] sm:$0xff]
        %v260 = vld [vmem:[%s250 + $0x30] sm:$0xff]
        %v261 = vld [vmem:[%s250 + $0x38] sm:$0xff]
        %v262 = vld [vmem:[%s250 + $0x40] sm:$0xff]
        %v263 = vld [vmem:[%s250 + $0x48] sm:$0xff]
        %v264 = vld [vmem:[%s250 + $0x50] sm:$0xff]
        %v265 = vld [vmem:[%s250 + $0x58] sm:$0xff]
        %v266 = vld [vmem:[%s250 + $0x60] sm:$0xff]
        %v267 = vld [vmem:[%s250 + $0x68] sm:$0xff]
        %v268 = vld [vmem:[%s250 + $0x70] sm:$0xff]
        %v269 = vld [vmem:[%s250 + $0x78] sm:$0xff]
        %v270 = vpack.c.bf16 %v255, %v254
        %v271 = vpack.c.bf16 %v257, %v256
        %v272 = vpack.c.bf16 %v259, %v258
        %v273 = vpack.c.bf16 %v261, %v260
        %v274 = vpack.c.bf16 %v263, %v262
        %v275 = vpack.c.bf16 %v265, %v264
        %v276 = vpack.c.bf16 %v267, %v266
        %v277 = vpack.c.bf16 %v269, %v268
        %v278 = vld [vmem:[%s1] sm:$0xf]
        %v279 = vld [vmem:[%s2] sm:$0x1]
        %v281 = vlaneseq
        %v282 = vshrl.u32 %v281, 7
        %v283 = vsub.s32 0, %v282
        %v284 = vrot.slane %v279, %v283
        %vm286 = vcmask 64512
        %v288 = vsel %vm286, %v270, 0
        %v291 = vsel %vm286, %v271, 0
        %v294 = vsel %vm286, %v272, 0
        %v297 = vsel %vm286, %v273, 0
        %v300 = vsel %vm286, %v274, 0
        %v303 = vsel %vm286, %v275, 0
        %v306 = vsel %vm286, %v276, 0
        %v309 = vsel %vm286, %v277, 0
        %vm311 = vcmask 1043456
        %v313 = vsel %vm311, %v278, 0
        %315 = vmatprep.subr.bf16.mxu0 0
        %316 = vmatpush1.bf16.msra.mxu0 0
        %317 = vmatprep.subr.bf16.mxu0 0
        %318 = vmatpush1.bf16.msra.mxu0 0
        %319 = vmatprep.subr.bf16.mxu0 0
        %320 = vmatpush1.bf16.msra.mxu0 0
        %321 = vmatprep.subr.bf16.mxu0 0
        %322 = vmatpush1.bf16.msra.mxu0 0
        %323 = vmatprep.subr.bf16.mxu0 0
        %324 = vmatpush1.bf16.msra.mxu0 0
        %325 = vmatprep.subr.bf16.mxu0 0
        %326 = vmatpush1.bf16.msra.mxu0 0
        %327 = vmatprep.subr.bf16.mxu0 0
        %328 = vmatpush1.bf16.msra.mxu0 0
        %329 = vmatprep.subr.bf16.mxu0 0
        %330 = vmatpush1.bf16.msra.mxu0 %v313
        %331 = vmatprep.subr.bf16.mxu0 0
        %332 = vmatpush2.bf16.msra.mxu0 0
        %333 = vmatprep.subr.bf16.mxu0 0
        %334 = vmatpush2.bf16.msra.mxu0 0
        %335 = vmatprep.subr.bf16.mxu0 0
        %336 = vmatpush2.bf16.msra.mxu0 0
        %337 = vmatprep.subr.bf16.mxu0 0
        %338 = vmatpush2.bf16.msra.mxu0 0
        %339 = vmatprep.subr.bf16.mxu0 0
        %340 = vmatpush2.bf16.msra.mxu0 0
        %341 = vmatprep.subr.bf16.mxu0 0
        %342 = vmatpush2.bf16.msra.mxu0 0
        %343 = vmatprep.subr.bf16.mxu0 0
        %344 = vmatpush2.bf16.msra.mxu0 0
        %345 = vmatprep.subr.bf16.mxu0 0
        %346 = vmatpush2.bf16.msra.mxu0 0
        %347 = vmatprep.mubr.bf16.mxu0 0
        %348 = vmatmul.mubr.bf16.gmra.mxu0 %v288
        %v349 = vpop.f32.mrf.mxu0
        %v350 = vadd.f32 %v284, %v349
        %v351 = vpop.f32.mrf.mxu0
        %v352 = vpop.f32.mrf.mxu0
        %v353 = vadd.f32 %v284, %v352
        %v354 = vpop.f32.mrf.mxu0
        %355 = vmatprep.mubr.bf16.mxu0 0
        %356 = vmatmul.mubr.bf16.gmra.mxu0 %v291
        %v357 = vpop.f32.mrf.mxu0
        %v358 = vadd.f32 %v284, %v357
        %v359 = vpop.f32.mrf.mxu0
        %v360 = vpop.f32.mrf.mxu0
        %v361 = vadd.f32 %v284, %v360
        %v362 = vpop.f32.mrf.mxu0
        %363 = vmatprep.mubr.bf16.mxu0 0
        %364 = vmatmul.mubr.bf16.gmra.mxu0 %v294
        %v365 = vpop.f32.mrf.mxu0
        %v366 = vadd.f32 %v284, %v365
        %v367 = vpop.f32.mrf.mxu0
        %v368 = vpop.f32.mrf.mxu0
        %v369 = vadd.f32 %v284, %v368
        %v370 = vpop.f32.mrf.mxu0
        %371 = vmatprep.mubr.bf16.mxu0 0
        %372 = vmatmul.mubr.bf16.gmra.mxu0 %v297
        %v373 = vpop.f32.mrf.mxu0
        %v374 = vadd.f32 %v284, %v373
        %v375 = vpop.f32.mrf.mxu0
        %v376 = vpop.f32.mrf.mxu0
        %v377 = vadd.f32 %v284, %v376
        %v378 = vpop.f32.mrf.mxu0
        %379 = vmatprep.mubr.bf16.mxu0 0
        %380 = vmatmul.mubr.bf16.gmra.mxu0 %v300
        %v381 = vpop.f32.mrf.mxu0
        %v382 = vadd.f32 %v284, %v381
        %v383 = vpop.f32.mrf.mxu0
        %v384 = vpop.f32.mrf.mxu0
        %v385 = vadd.f32 %v284, %v384
        %v386 = vpop.f32.mrf.mxu0
        %387 = vmatprep.mubr.bf16.mxu0 0
        %388 = vmatmul.mubr.bf16.gmra.mxu0 %v303
        %v389 = vpop.f32.mrf.mxu0
        %v390 = vadd.f32 %v284, %v389
        %v391 = vpop.f32.mrf.mxu0
        %v392 = vpop.f32.mrf.mxu0
        %v393 = vadd.f32 %v284, %v392
        %v394 = vpop.f32.mrf.mxu0
        %395 = vmatprep.mubr.bf16.mxu0 0
        %396 = vmatmul.mubr.bf16.gmra.mxu0 %v306
        %v397 = vpop.f32.mrf.mxu0
        %v398 = vadd.f32 %v284, %v397
        %v399 = vpop.f32.mrf.mxu0
        %v400 = vpop.f32.mrf.mxu0
        %v401 = vadd.f32 %v284, %v400
        %v402 = vpop.f32.mrf.mxu0
        %403 = vmatprep.mubr.bf16.mxu0 0
        %404 = vmatmul.mubr.bf16.gmra.mxu0 %v309
        %v405 = vpop.f32.mrf.mxu0
        %v406 = vadd.f32 %v284, %v405
        %v407 = vpop.f32.mrf.mxu0
        %v408 = vpop.f32.mrf.mxu0
        %v409 = vadd.f32 %v284, %v408
        %v410 = vpop.f32.mrf.mxu0
        %411 = vdwg.mxu0
        %v412 = vtanh.pop %v350
        %v413 = vtanh.pop %v353
        %v414 = vtanh.pop %v358
        %v415 = vtanh.pop %v361
        %v416 = vtanh.pop %v366
        %v417 = vtanh.pop %v369
        %v418 = vtanh.pop %v374
        %v419 = vtanh.pop %v377
        %v420 = vtanh.pop %v382
        %v421 = vtanh.pop %v385
        %v422 = vtanh.pop %v390
        %v423 = vtanh.pop %v393
        %v424 = vtanh.pop %v398
        %v425 = vtanh.pop %v401
        %v426 = vtanh.pop %v406
        %v427 = vtanh.pop %v409
        %v428 = vpack.c.bf16 %v413, %v412
        %v429 = vpack.c.bf16 %v415, %v414
        %v430 = vpack.c.bf16 %v417, %v416
        %v431 = vpack.c.bf16 %v419, %v418
        %v432 = vpack.c.bf16 %v421, %v420
        %v433 = vpack.c.bf16 %v423, %v422
        %v434 = vpack.c.bf16 %v425, %v424
        %v435 = vpack.c.bf16 %v427, %v426
        %v436 = vld [vmem:[%s3] sm:$0xf]
        %v437 = vld [vmem:[%s3 + $0x4] sm:$0xf]
        %v438 = vld [vmem:[%s3 + $0x8] sm:$0xf]
        %v439 = vld [vmem:[%s3 + $0xc] sm:$0xf]
        %v440 = vld [vmem:[%s3 + $0x10] sm:$0xf]
        %v441 = vld [vmem:[%s3 + $0x14] sm:$0xf]
        %v442 = vld [vmem:[%s3 + $0x18] sm:$0xf]
        %v443 = vld [vmem:[%s3 + $0x1c] sm:$0xf]
        %v444 = vld [vmem:[%s3 + $0x20] sm:$0xf]
        %v445 = vld [vmem:[%s3 + $0x24] sm:$0xf]
        %v446 = vld [vmem:[%s3 + $0x28] sm:$0xf]
        %v447 = vld [vmem:[%s3 + $0x2c] sm:$0xf]
        %v448 = vld [vmem:[%s3 + $0x30] sm:$0xf]
        %v449 = vld [vmem:[%s3 + $0x34] sm:$0xf]
        %v450 = vld [vmem:[%s3 + $0x38] sm:$0xf]
        %v451 = vld [vmem:[%s3 + $0x3c] sm:$0xf]
        %v452 = vld [vmem:[%s4] sm:$0x1]
        %v454 = vlaneseq
        %v455 = vshrl.u32 %v454, 7
        %v456 = vsub.s32 0, %v455
        %v457 = vrot.slane %v452, %v456
        %v475 = vunpack.c.l.b16 %v436
        %v476 = vunpack.c.l.b16 %v437
        %v477 = vunpack.c.l.b16 %v438
        %v478 = vunpack.c.l.b16 %v439
        %v479 = vunpack.c.l.b16 %v440
        %v480 = vunpack.c.l.b16 %v441
        %v481 = vunpack.c.l.b16 %v442
        %v482 = vunpack.c.l.b16 %v443
        %v483 = vunpack.c.l.b16 %v444
        %v484 = vunpack.c.l.b16 %v445
        %v485 = vunpack.c.l.b16 %v446
        %v486 = vunpack.c.l.b16 %v447
        %v487 = vunpack.c.l.b16 %v448
        %v488 = vunpack.c.l.b16 %v449
        %v489 = vunpack.c.l.b16 %v450
        %v490 = vunpack.c.l.b16 %v451
        %v491 = vpack.c.b16 %v476, %v475
        %v492 = vpack.c.b16 %v478, %v477
        %v493 = vpack.c.b16 %v480, %v479
        %v494 = vpack.c.b16 %v482, %v481
        %v495 = vpack.c.b16 %v484, %v483
        %v496 = vpack.c.b16 %v486, %v485
        %v497 = vpack.c.b16 %v488, %v487
        %v498 = vpack.c.b16 %v490, %v489
        %507 = vmatprep.subr.bf16.mxu0 0
        %508 = vmatpush1.bf16.msra.mxu0 %v498
        %509 = vmatprep.subr.bf16.mxu0 0
        %510 = vmatpush1.bf16.msra.mxu0 %v497
        %511 = vmatprep.subr.bf16.mxu0 0
        %512 = vmatpush1.bf16.msra.mxu0 %v496
        %513 = vmatprep.subr.bf16.mxu0 0
        %514 = vmatpush1.bf16.msra.mxu0 %v495
        %515 = vmatprep.subr.bf16.mxu0 0
        %516 = vmatpush1.bf16.msra.mxu0 %v494
        %517 = vmatprep.subr.bf16.mxu0 0
        %518 = vmatpush1.bf16.msra.mxu0 %v493
        %519 = vmatprep.subr.bf16.mxu0 0
        %520 = vmatpush1.bf16.msra.mxu0 %v492
        %521 = vmatprep.subr.bf16.mxu0 0
        %522 = vmatpush1.bf16.msra.mxu0 %v491
        %523 = vmatprep.subr.bf16.mxu0 0
        %524 = vmatpush2.bf16.msra.mxu0 0
        %525 = vmatprep.subr.bf16.mxu0 0
        %526 = vmatpush2.bf16.msra.mxu0 0
        %527 = vmatprep.subr.bf16.mxu0 0
        %528 = vmatpush2.bf16.msra.mxu0 0
        %529 = vmatprep.subr.bf16.mxu0 0
        %530 = vmatpush2.bf16.msra.mxu0 0
        %531 = vmatprep.subr.bf16.mxu0 0
        %532 = vmatpush2.bf16.msra.mxu0 0
        %533 = vmatprep.subr.bf16.mxu0 0
        %534 = vmatpush2.bf16.msra.mxu0 0
        %535 = vmatprep.subr.bf16.mxu0 0
        %536 = vmatpush2.bf16.msra.mxu0 0
        %537 = vmatprep.subr.bf16.mxu0 0
        %538 = vmatpush2.bf16.msra.mxu0 0
        %539 = vmatprep.mubr.bf16.mxu0 0
        %540 = vmatmul.mubr.bf16.gmra.mxu0 %v428
        %v541 = vpop.f32.mrf.mxu0
        %v542 = vadd.f32 %v457, %v541
        %v543 = vpop.f32.mrf.mxu0
        %v544 = vpop.f32.mrf.mxu0
        %v545 = vadd.f32 %v457, %v544
        %v546 = vpop.f32.mrf.mxu0
        %547 = vmatprep.mubr.bf16.mxu0 0
        %548 = vmatmul.mubr.bf16.gmra.mxu0 %v429
        %v549 = vpop.f32.mrf.mxu0
        %v550 = vadd.f32 %v457, %v549
        %v551 = vpop.f32.mrf.mxu0
        %v552 = vpop.f32.mrf.mxu0
        %v553 = vadd.f32 %v457, %v552
        %v554 = vpop.f32.mrf.mxu0
        %555 = vmatprep.mubr.bf16.mxu0 0
        %556 = vmatmul.mubr.bf16.gmra.mxu0 %v430
        %v557 = vpop.f32.mrf.mxu0
        %v558 = vadd.f32 %v457, %v557
        %v559 = vpop.f32.mrf.mxu0
        %v560 = vpop.f32.mrf.mxu0
        %v561 = vadd.f32 %v457, %v560
        %v562 = vpop.f32.mrf.mxu0
        %563 = vmatprep.mubr.bf16.mxu0 0
        %564 = vmatmul.mubr.bf16.gmra.mxu0 %v431
        %v565 = vpop.f32.mrf.mxu0
        %v566 = vadd.f32 %v457, %v565
        %v567 = vpop.f32.mrf.mxu0
        %v568 = vpop.f32.mrf.mxu0
        %v569 = vadd.f32 %v457, %v568
        %v570 = vpop.f32.mrf.mxu0
        %571 = vmatprep.mubr.bf16.mxu0 0
        %572 = vmatmul.mubr.bf16.gmra.mxu0 %v432
        %v573 = vpop.f32.mrf.mxu0
        %v574 = vadd.f32 %v457, %v573
        %v575 = vpop.f32.mrf.mxu0
        %v576 = vpop.f32.mrf.mxu0
        %v577 = vadd.f32 %v457, %v576
        %v578 = vpop.f32.mrf.mxu0
        %579 = vmatprep.mubr.bf16.mxu0 0
        %580 = vmatmul.mubr.bf16.gmra.mxu0 %v433
        %v581 = vpop.f32.mrf.mxu0
        %v582 = vadd.f32 %v457, %v581
        %v583 = vpop.f32.mrf.mxu0
        %v584 = vpop.f32.mrf.mxu0
        %v585 = vadd.f32 %v457, %v584
        %v586 = vpop.f32.mrf.mxu0
        %587 = vmatprep.mubr.bf16.mxu0 0
        %588 = vmatmul.mubr.bf16.gmra.mxu0 %v434
        %v589 = vpop.f32.mrf.mxu0
        %v590 = vadd.f32 %v457, %v589
        %v591 = vpop.f32.mrf.mxu0
        %v592 = vpop.f32.mrf.mxu0
        %v593 = vadd.f32 %v457, %v592
        %v594 = vpop.f32.mrf.mxu0
        %595 = vmatprep.mubr.bf16.mxu0 0
        %596 = vmatmul.mubr.bf16.gmra.mxu0 %v435
        %v597 = vpop.f32.mrf.mxu0
        %v598 = vadd.f32 %v457, %v597
        %v599 = vpop.f32.mrf.mxu0
        %v600 = vpop.f32.mrf.mxu0
        %v601 = vadd.f32 %v457, %v600
        %v602 = vpop.f32.mrf.mxu0
        %603 = vdwg.mxu0
        %v604 = vtanh.pop %v542
        %v605 = vtanh.pop %v545
        %v606 = vtanh.pop %v550
        %v607 = vtanh.pop %v553
        %v608 = vtanh.pop %v558
        %v609 = vtanh.pop %v561
        %v610 = vtanh.pop %v566
        %v611 = vtanh.pop %v569
        %v612 = vtanh.pop %v574
        %v613 = vtanh.pop %v577
        %v614 = vtanh.pop %v582
        %v615 = vtanh.pop %v585
        %v616 = vtanh.pop %v590
        %v617 = vtanh.pop %v593
        %v618 = vtanh.pop %v598
        %v619 = vtanh.pop %v601
        %v620 = vadd.f32 %v412, %v604
        %v621 = vadd.f32 %v413, %v605
        %v622 = vadd.f32 %v414, %v606
        %v623 = vadd.f32 %v415, %v607
        %v624 = vadd.f32 %v416, %v608
        %v625 = vadd.f32 %v417, %v609
        %v626 = vadd.f32 %v418, %v610
        %v627 = vadd.f32 %v419, %v611
        %v628 = vadd.f32 %v420, %v612
        %v629 = vadd.f32 %v421, %v613
        %v630 = vadd.f32 %v422, %v614
        %v631 = vadd.f32 %v423, %v615
        %v632 = vadd.f32 %v424, %v616
        %v633 = vadd.f32 %v425, %v617
        %v634 = vadd.f32 %v426, %v618
        %v635 = vadd.f32 %v427, %v619
        %v636 = vpack.c.bf16 %v621, %v620
        %v637 = vpack.c.bf16 %v623, %v622
        %v638 = vpack.c.bf16 %v625, %v624
        %v639 = vpack.c.bf16 %v627, %v626
        %v640 = vpack.c.bf16 %v629, %v628
        %v641 = vpack.c.bf16 %v631, %v630
        %v642 = vpack.c.bf16 %v633, %v632
        %v643 = vpack.c.bf16 %v635, %v634
        %s644 = scalar_lea.vmem %s3, 64
        %v645 = vld [vmem:[%s644] sm:$0xf]
        %v646 = vld [vmem:[%s644 + $0x4] sm:$0xf]
        %v647 = vld [vmem:[%s644 + $0x8] sm:$0xf]
        %v648 = vld [vmem:[%s644 + $0xc] sm:$0xf]
        %v649 = vld [vmem:[%s644 + $0x10] sm:$0xf]
        %v650 = vld [vmem:[%s644 + $0x14] sm:$0xf]
        %v651 = vld [vmem:[%s644 + $0x18] sm:$0xf]
        %v652 = vld [vmem:[%s644 + $0x1c] sm:$0xf]
        %v653 = vld [vmem:[%s644 + $0x20] sm:$0xf]
        %v654 = vld [vmem:[%s644 + $0x24] sm:$0xf]
        %v655 = vld [vmem:[%s644 + $0x28] sm:$0xf]
        %v656 = vld [vmem:[%s644 + $0x2c] sm:$0xf]
        %v657 = vld [vmem:[%s644 + $0x30] sm:$0xf]
        %v658 = vld [vmem:[%s644 + $0x34] sm:$0xf]
        %v659 = vld [vmem:[%s644 + $0x38] sm:$0xf]
        %v660 = vld [vmem:[%s644 + $0x3c] sm:$0xf]
        %s661 = scalar_lea.vmem %s4, 1
        %v662 = vld [vmem:[%s661] sm:$0x1]
        %v664 = vlaneseq
        %v665 = vshrl.u32 %v664, 7
        %v666 = vsub.s32 0, %v665
        %v667 = vrot.slane %v662, %v666
        %v685 = vunpack.c.l.b16 %v645
        %v686 = vunpack.c.l.b16 %v646
        %v687 = vunpack.c.l.b16 %v647
        %v688 = vunpack.c.l.b16 %v648
        %v689 = vunpack.c.l.b16 %v649
        %v690 = vunpack.c.l.b16 %v650
        %v691 = vunpack.c.l.b16 %v651
        %v692 = vunpack.c.l.b16 %v652
        %v693 = vunpack.c.l.b16 %v653
        %v694 = vunpack.c.l.b16 %v654
        %v695 = vunpack.c.l.b16 %v655
        %v696 = vunpack.c.l.b16 %v656
        %v697 = vunpack.c.l.b16 %v657
        %v698 = vunpack.c.l.b16 %v658
        %v699 = vunpack.c.l.b16 %v659
        %v700 = vunpack.c.l.b16 %v660
        %v701 = vpack.c.b16 %v686, %v685
        %v702 = vpack.c.b16 %v688, %v687
        %v703 = vpack.c.b16 %v690, %v689
        %v704 = vpack.c.b16 %v692, %v691
        %v705 = vpack.c.b16 %v694, %v693
        %v706 = vpack.c.b16 %v696, %v695
        %v707 = vpack.c.b16 %v698, %v697
        %v708 = vpack.c.b16 %v700, %v699
        %717 = vmatprep.subr.bf16.mxu0 0
        %718 = vmatpush1.bf16.msra.mxu0 %v708
        %719 = vmatprep.subr.bf16.mxu0 0
        %720 = vmatpush1.bf16.msra.mxu0 %v707
        %721 = vmatprep.subr.bf16.mxu0 0
        %722 = vmatpush1.bf16.msra.mxu0 %v706
        %723 = vmatprep.subr.bf16.mxu0 0
        %724 = vmatpush1.bf16.msra.mxu0 %v705
        %725 = vmatprep.subr.bf16.mxu0 0
        %726 = vmatpush1.bf16.msra.mxu0 %v704
        %727 = vmatprep.subr.bf16.mxu0 0
        %728 = vmatpush1.bf16.msra.mxu0 %v703
        %729 = vmatprep.subr.bf16.mxu0 0
        %730 = vmatpush1.bf16.msra.mxu0 %v702
        %731 = vmatprep.subr.bf16.mxu0 0
        %732 = vmatpush1.bf16.msra.mxu0 %v701
        %733 = vmatprep.subr.bf16.mxu0 0
        %734 = vmatpush2.bf16.msra.mxu0 0
        %735 = vmatprep.subr.bf16.mxu0 0
        %736 = vmatpush2.bf16.msra.mxu0 0
        %737 = vmatprep.subr.bf16.mxu0 0
        %738 = vmatpush2.bf16.msra.mxu0 0
        %739 = vmatprep.subr.bf16.mxu0 0
        %740 = vmatpush2.bf16.msra.mxu0 0
        %741 = vmatprep.subr.bf16.mxu0 0
        %742 = vmatpush2.bf16.msra.mxu0 0
        %743 = vmatprep.subr.bf16.mxu0 0
        %744 = vmatpush2.bf16.msra.mxu0 0
        %745 = vmatprep.subr.bf16.mxu0 0
        %746 = vmatpush2.bf16.msra.mxu0 0
        %747 = vmatprep.subr.bf16.mxu0 0
        %748 = vmatpush2.bf16.msra.mxu0 0
        %749 = vmatprep.mubr.bf16.mxu0 0
        %750 = vmatmul.mubr.bf16.gmra.mxu0 %v636
        %v751 = vpop.f32.mrf.mxu0
        %v752 = vadd.f32 %v667, %v751
        %v753 = vpop.f32.mrf.mxu0
        %v754 = vpop.f32.mrf.mxu0
        %v755 = vadd.f32 %v667, %v754
        %v756 = vpop.f32.mrf.mxu0
        %757 = vmatprep.mubr.bf16.mxu0 0
        %758 = vmatmul.mubr.bf16.gmra.mxu0 %v637
        %v759 = vpop.f32.mrf.mxu0
        %v760 = vadd.f32 %v667, %v759
        %v761 = vpop.f32.mrf.mxu0
        %v762 = vpop.f32.mrf.mxu0
        %v763 = vadd.f32 %v667, %v762
        %v764 = vpop.f32.mrf.mxu0
        %765 = vmatprep.mubr.bf16.mxu0 0
        %766 = vmatmul.mubr.bf16.gmra.mxu0 %v638
        %v767 = vpop.f32.mrf.mxu0
        %v768 = vadd.f32 %v667, %v767
        %v769 = vpop.f32.mrf.mxu0
        %v770 = vpop.f32.mrf.mxu0
        %v771 = vadd.f32 %v667, %v770
        %v772 = vpop.f32.mrf.mxu0
        %773 = vmatprep.mubr.bf16.mxu0 0
        %774 = vmatmul.mubr.bf16.gmra.mxu0 %v639
        %v775 = vpop.f32.mrf.mxu0
        %v776 = vadd.f32 %v667, %v775
        %v777 = vpop.f32.mrf.mxu0
        %v778 = vpop.f32.mrf.mxu0
        %v779 = vadd.f32 %v667, %v778
        %v780 = vpop.f32.mrf.mxu0
        %781 = vmatprep.mubr.bf16.mxu0 0
        %782 = vmatmul.mubr.bf16.gmra.mxu0 %v640
        %v783 = vpop.f32.mrf.mxu0
        %v784 = vadd.f32 %v667, %v783
        %v785 = vpop.f32.mrf.mxu0
        %v786 = vpop.f32.mrf.mxu0
        %v787 = vadd.f32 %v667, %v786
        %v788 = vpop.f32.mrf.mxu0
        %789 = vmatprep.mubr.bf16.mxu0 0
        %790 = vmatmul.mubr.bf16.gmra.mxu0 %v641
        %v791 = vpop.f32.mrf.mxu0
        %v792 = vadd.f32 %v667, %v791
        %v793 = vpop.f32.mrf.mxu0
        %v794 = vpop.f32.mrf.mxu0
        %v795 = vadd.f32 %v667, %v794
        %v796 = vpop.f32.mrf.mxu0
        %797 = vmatprep.mubr.bf16.mxu0 0
        %798 = vmatmul.mubr.bf16.gmra.mxu0 %v642
        %v799 = vpop.f32.mrf.mxu0
        %v800 = vadd.f32 %v667, %v799
        %v801 = vpop.f32.mrf.mxu0
        %v802 = vpop.f32.mrf.mxu0
        %v803 = vadd.f32 %v667, %v802
        %v804 = vpop.f32.mrf.mxu0
        %805 = vmatprep.mubr.bf16.mxu0 0
        %806 = vmatmul.mubr.bf16.gmra.mxu0 %v643
        %v807 = vpop.f32.mrf.mxu0
        %v808 = vadd.f32 %v667, %v807
        %v809 = vpop.f32.mrf.mxu0
        %v810 = vpop.f32.mrf.mxu0
        %v811 = vadd.f32 %v667, %v810
        %v812 = vpop.f32.mrf.mxu0
        %813 = vdwg.mxu0
        %v814 = vtanh.pop %v752
        %v815 = vtanh.pop %v755
        %v816 = vtanh.pop %v760
        %v817 = vtanh.pop %v763
        %v818 = vtanh.pop %v768
        %v819 = vtanh.pop %v771
        %v820 = vtanh.pop %v776
        %v821 = vtanh.pop %v779
        %v822 = vtanh.pop %v784
        %v823 = vtanh.pop %v787
        %v824 = vtanh.pop %v792
        %v825 = vtanh.pop %v795
        %v826 = vtanh.pop %v800
        %v827 = vtanh.pop %v803
        %v828 = vtanh.pop %v808
        %v829 = vtanh.pop %v811
        %v830 = vadd.f32 %v620, %v814
        %v831 = vadd.f32 %v621, %v815
        %v832 = vadd.f32 %v622, %v816
        %v833 = vadd.f32 %v623, %v817
        %v834 = vadd.f32 %v624, %v818
        %v835 = vadd.f32 %v625, %v819
        %v836 = vadd.f32 %v626, %v820
        %v837 = vadd.f32 %v627, %v821
        %v838 = vadd.f32 %v628, %v822
        %v839 = vadd.f32 %v629, %v823
        %v840 = vadd.f32 %v630, %v824
        %v841 = vadd.f32 %v631, %v825
        %v842 = vadd.f32 %v632, %v826
        %v843 = vadd.f32 %v633, %v827
        %v844 = vadd.f32 %v634, %v828
        %v845 = vadd.f32 %v635, %v829
        %v846 = vpack.c.bf16 %v831, %v830
        %v847 = vpack.c.bf16 %v833, %v832
        %v848 = vpack.c.bf16 %v835, %v834
        %v849 = vpack.c.bf16 %v837, %v836
        %v850 = vpack.c.bf16 %v839, %v838
        %v851 = vpack.c.bf16 %v841, %v840
        %v852 = vpack.c.bf16 %v843, %v842
        %v853 = vpack.c.bf16 %v845, %v844
        %s854 = scalar_lea.vmem %s3, 128
        %v855 = vld [vmem:[%s854] sm:$0xf]
        %v856 = vld [vmem:[%s854 + $0x4] sm:$0xf]
        %v857 = vld [vmem:[%s854 + $0x8] sm:$0xf]
        %v858 = vld [vmem:[%s854 + $0xc] sm:$0xf]
        %v859 = vld [vmem:[%s854 + $0x10] sm:$0xf]
        %v860 = vld [vmem:[%s854 + $0x14] sm:$0xf]
        %v861 = vld [vmem:[%s854 + $0x18] sm:$0xf]
        %v862 = vld [vmem:[%s854 + $0x1c] sm:$0xf]
        %v863 = vld [vmem:[%s854 + $0x20] sm:$0xf]
        %v864 = vld [vmem:[%s854 + $0x24] sm:$0xf]
        %v865 = vld [vmem:[%s854 + $0x28] sm:$0xf]
        %v866 = vld [vmem:[%s854 + $0x2c] sm:$0xf]
        %v867 = vld [vmem:[%s854 + $0x30] sm:$0xf]
        %v868 = vld [vmem:[%s854 + $0x34] sm:$0xf]
        %v869 = vld [vmem:[%s854 + $0x38] sm:$0xf]
        %v870 = vld [vmem:[%s854 + $0x3c] sm:$0xf]
        %s871 = scalar_lea.vmem %s4, 2
        %v872 = vld [vmem:[%s871] sm:$0x1]
        %v874 = vlaneseq
        %v875 = vshrl.u32 %v874, 7
        %v876 = vsub.s32 0, %v875
        %v877 = vrot.slane %v872, %v876
        %v895 = vunpack.c.l.b16 %v855
        %v896 = vunpack.c.l.b16 %v856
        %v897 = vunpack.c.l.b16 %v857
        %v898 = vunpack.c.l.b16 %v858
        %v899 = vunpack.c.l.b16 %v859
        %v900 = vunpack.c.l.b16 %v860
        %v901 = vunpack.c.l.b16 %v861
        %v902 = vunpack.c.l.b16 %v862
        %v903 = vunpack.c.l.b16 %v863
        %v904 = vunpack.c.l.b16 %v864
        %v905 = vunpack.c.l.b16 %v865
        %v906 = vunpack.c.l.b16 %v866
        %v907 = vunpack.c.l.b16 %v867
        %v908 = vunpack.c.l.b16 %v868
        %v909 = vunpack.c.l.b16 %v869
        %v910 = vunpack.c.l.b16 %v870
        %v911 = vpack.c.b16 %v896, %v895
        %v912 = vpack.c.b16 %v898, %v897
        %v913 = vpack.c.b16 %v900, %v899
        %v914 = vpack.c.b16 %v902, %v901
        %v915 = vpack.c.b16 %v904, %v903
        %v916 = vpack.c.b16 %v906, %v905
        %v917 = vpack.c.b16 %v908, %v907
        %v918 = vpack.c.b16 %v910, %v909
        %927 = vmatprep.subr.bf16.mxu0 0
        %928 = vmatpush1.bf16.msra.mxu0 %v918
        %929 = vmatprep.subr.bf16.mxu0 0
        %930 = vmatpush1.bf16.msra.mxu0 %v917
        %931 = vmatprep.subr.bf16.mxu0 0
        %932 = vmatpush1.bf16.msra.mxu0 %v916
        %933 = vmatprep.subr.bf16.mxu0 0
        %934 = vmatpush1.bf16.msra.mxu0 %v915
        %935 = vmatprep.subr.bf16.mxu0 0
        %936 = vmatpush1.bf16.msra.mxu0 %v914
        %937 = vmatprep.subr.bf16.mxu0 0
        %938 = vmatpush1.bf16.msra.mxu0 %v913
        %939 = vmatprep.subr.bf16.mxu0 0
        %940 = vmatpush1.bf16.msra.mxu0 %v912
        %941 = vmatprep.subr.bf16.mxu0 0
        %942 = vmatpush1.bf16.msra.mxu0 %v911
        %943 = vmatprep.subr.bf16.mxu0 0
        %944 = vmatpush2.bf16.msra.mxu0 0
        %945 = vmatprep.subr.bf16.mxu0 0
        %946 = vmatpush2.bf16.msra.mxu0 0
        %947 = vmatprep.subr.bf16.mxu0 0
        %948 = vmatpush2.bf16.msra.mxu0 0
        %949 = vmatprep.subr.bf16.mxu0 0
        %950 = vmatpush2.bf16.msra.mxu0 0
        %951 = vmatprep.subr.bf16.mxu0 0
        %952 = vmatpush2.bf16.msra.mxu0 0
        %953 = vmatprep.subr.bf16.mxu0 0
        %954 = vmatpush2.bf16.msra.mxu0 0
        %955 = vmatprep.subr.bf16.mxu0 0
        %956 = vmatpush2.bf16.msra.mxu0 0
        %957 = vmatprep.subr.bf16.mxu0 0
        %958 = vmatpush2.bf16.msra.mxu0 0
        %959 = vmatprep.mubr.bf16.mxu0 0
        %960 = vmatmul.mubr.bf16.gmra.mxu0 %v846
        %v961 = vpop.f32.mrf.mxu0
        %v962 = vadd.f32 %v877, %v961
        %v963 = vpop.f32.mrf.mxu0
        %v964 = vpop.f32.mrf.mxu0
        %v965 = vadd.f32 %v877, %v964
        %v966 = vpop.f32.mrf.mxu0
        %967 = vmatprep.mubr.bf16.mxu0 0
        %968 = vmatmul.mubr.bf16.gmra.mxu0 %v847
        %v969 = vpop.f32.mrf.mxu0
        %v970 = vadd.f32 %v877, %v969
        %v971 = vpop.f32.mrf.mxu0
        %v972 = vpop.f32.mrf.mxu0
        %v973 = vadd.f32 %v877, %v972
        %v974 = vpop.f32.mrf.mxu0
        %975 = vmatprep.mubr.bf16.mxu0 0
        %976 = vmatmul.mubr.bf16.gmra.mxu0 %v848
        %v977 = vpop.f32.mrf.mxu0
        %v978 = vadd.f32 %v877, %v977
        %v979 = vpop.f32.mrf.mxu0
        %v980 = vpop.f32.mrf.mxu0
        %v981 = vadd.f32 %v877, %v980
        %v982 = vpop.f32.mrf.mxu0
        %983 = vmatprep.mubr.bf16.mxu0 0
        %984 = vmatmul.mubr.bf16.gmra.mxu0 %v849
        %v985 = vpop.f32.mrf.mxu0
        %v986 = vadd.f32 %v877, %v985
        %v987 = vpop.f32.mrf.mxu0
        %v988 = vpop.f32.mrf.mxu0
        %v989 = vadd.f32 %v877, %v988
        %v990 = vpop.f32.mrf.mxu0
        %991 = vmatprep.mubr.bf16.mxu0 0
        %992 = vmatmul.mubr.bf16.gmra.mxu0 %v850
        %v993 = vpop.f32.mrf.mxu0
        %v994 = vadd.f32 %v877, %v993
        %v995 = vpop.f32.mrf.mxu0
        %v996 = vpop.f32.mrf.mxu0
        %v997 = vadd.f32 %v877, %v996
        %v998 = vpop.f32.mrf.mxu0
        %999 = vmatprep.mubr.bf16.mxu0 0
        %1000 = vmatmul.mubr.bf16.gmra.mxu0 %v851
        %v1001 = vpop.f32.mrf.mxu0
        %v1002 = vadd.f32 %v877, %v1001
        %v1003 = vpop.f32.mrf.mxu0
        %v1004 = vpop.f32.mrf.mxu0
        %v1005 = vadd.f32 %v877, %v1004
        %v1006 = vpop.f32.mrf.mxu0
        %1007 = vmatprep.mubr.bf16.mxu0 0
        %1008 = vmatmul.mubr.bf16.gmra.mxu0 %v852
        %v1009 = vpop.f32.mrf.mxu0
        %v1010 = vadd.f32 %v877, %v1009
        %v1011 = vpop.f32.mrf.mxu0
        %v1012 = vpop.f32.mrf.mxu0
        %v1013 = vadd.f32 %v877, %v1012
        %v1014 = vpop.f32.mrf.mxu0
        %1015 = vmatprep.mubr.bf16.mxu0 0
        %1016 = vmatmul.mubr.bf16.gmra.mxu0 %v853
        %v1017 = vpop.f32.mrf.mxu0
        %v1018 = vadd.f32 %v877, %v1017
        %v1019 = vpop.f32.mrf.mxu0
        %v1020 = vpop.f32.mrf.mxu0
        %v1021 = vadd.f32 %v877, %v1020
        %v1022 = vpop.f32.mrf.mxu0
        %1023 = vdwg.mxu0
        %v1024 = vtanh.pop %v962
        %v1025 = vtanh.pop %v965
        %v1026 = vtanh.pop %v970
        %v1027 = vtanh.pop %v973
        %v1028 = vtanh.pop %v978
        %v1029 = vtanh.pop %v981
        %v1030 = vtanh.pop %v986
        %v1031 = vtanh.pop %v989
        %v1032 = vtanh.pop %v994
        %v1033 = vtanh.pop %v997
        %v1034 = vtanh.pop %v1002
        %v1035 = vtanh.pop %v1005
        %v1036 = vtanh.pop %v1010
        %v1037 = vtanh.pop %v1013
        %v1038 = vtanh.pop %v1018
        %v1039 = vtanh.pop %v1021
        %v1040 = vadd.f32 %v830, %v1024
        %v1041 = vadd.f32 %v831, %v1025
        %v1042 = vadd.f32 %v832, %v1026
        %v1043 = vadd.f32 %v833, %v1027
        %v1044 = vadd.f32 %v834, %v1028
        %v1045 = vadd.f32 %v835, %v1029
        %v1046 = vadd.f32 %v836, %v1030
        %v1047 = vadd.f32 %v837, %v1031
        %v1048 = vadd.f32 %v838, %v1032
        %v1049 = vadd.f32 %v839, %v1033
        %v1050 = vadd.f32 %v840, %v1034
        %v1051 = vadd.f32 %v841, %v1035
        %v1052 = vadd.f32 %v842, %v1036
        %v1053 = vadd.f32 %v843, %v1037
        %v1054 = vadd.f32 %v844, %v1038
        %v1055 = vadd.f32 %v845, %v1039
        %v1056 = vpack.c.bf16 %v1041, %v1040
        %v1057 = vpack.c.bf16 %v1043, %v1042
        %v1058 = vpack.c.bf16 %v1045, %v1044
        %v1059 = vpack.c.bf16 %v1047, %v1046
        %v1060 = vpack.c.bf16 %v1049, %v1048
        %v1061 = vpack.c.bf16 %v1051, %v1050
        %v1062 = vpack.c.bf16 %v1053, %v1052
        %v1063 = vpack.c.bf16 %v1055, %v1054
        %v1064 = vld [vmem:[%s5] sm:$0xf]
        %v1065 = vld [vmem:[%s5 + $0x4] sm:$0xf]
        %v1066 = vld [vmem:[%s5 + $0x8] sm:$0xf]
        %v1067 = vld [vmem:[%s5 + $0xc] sm:$0xf]
        %v1068 = vld [vmem:[%s5 + $0x10] sm:$0xf]
        %v1069 = vld [vmem:[%s5 + $0x14] sm:$0xf]
        %v1070 = vld [vmem:[%s5 + $0x18] sm:$0xf]
        %v1071 = vld [vmem:[%s5 + $0x1c] sm:$0xf]
        %v1072 = vld [vmem:[%s5 + $0x20] sm:$0xf]
        %v1073 = vld [vmem:[%s5 + $0x24] sm:$0xf]
        %v1074 = vld [vmem:[%s5 + $0x28] sm:$0xf]
        %v1075 = vld [vmem:[%s5 + $0x2c] sm:$0xf]
        %v1076 = vld [vmem:[%s5 + $0x30] sm:$0xf]
        %v1077 = vld [vmem:[%s5 + $0x34] sm:$0xf]
        %v1078 = vld [vmem:[%s5 + $0x38] sm:$0xf]
        %v1079 = vld [vmem:[%s5 + $0x3c] sm:$0xf]
        %v1096 = vunpack.c.l.b16 %v1064
        %v1097 = vunpack.c.l.b16 %v1065
        %v1098 = vunpack.c.l.b16 %v1066
        %v1099 = vunpack.c.l.b16 %v1067
        %v1100 = vunpack.c.l.b16 %v1068
        %v1101 = vunpack.c.l.b16 %v1069
        %v1102 = vunpack.c.l.b16 %v1070
        %v1103 = vunpack.c.l.b16 %v1071
        %v1104 = vunpack.c.l.b16 %v1072
        %v1105 = vunpack.c.l.b16 %v1073
        %v1106 = vunpack.c.l.b16 %v1074
        %v1107 = vunpack.c.l.b16 %v1075
        %v1108 = vunpack.c.l.b16 %v1076
        %v1109 = vunpack.c.l.b16 %v1077
        %v1110 = vunpack.c.l.b16 %v1078
        %v1111 = vunpack.c.l.b16 %v1079
        %v1112 = vpack.c.b16 %v1097, %v1096
        %v1113 = vpack.c.b16 %v1099, %v1098
        %v1114 = vpack.c.b16 %v1101, %v1100
        %v1115 = vpack.c.b16 %v1103, %v1102
        %v1116 = vpack.c.b16 %v1105, %v1104
        %v1117 = vpack.c.b16 %v1107, %v1106
        %v1118 = vpack.c.b16 %v1109, %v1108
        %v1119 = vpack.c.b16 %v1111, %v1110
        %1128 = vmatprep.subr.bf16.mxu0 0
        %1129 = vmatpush1.bf16.msra.mxu0 %v1119
        %1130 = vmatprep.subr.bf16.mxu0 0
        %1131 = vmatpush1.bf16.msra.mxu0 %v1118
        %1132 = vmatprep.subr.bf16.mxu0 0
        %1133 = vmatpush1.bf16.msra.mxu0 %v1117
        %1134 = vmatprep.subr.bf16.mxu0 0
        %1135 = vmatpush1.bf16.msra.mxu0 %v1116
        %1136 = vmatprep.subr.bf16.mxu0 0
        %1137 = vmatpush1.bf16.msra.mxu0 %v1115
        %1138 = vmatprep.subr.bf16.mxu0 0
        %1139 = vmatpush1.bf16.msra.mxu0 %v1114
        %1140 = vmatprep.subr.bf16.mxu0 0
        %1141 = vmatpush1.bf16.msra.mxu0 %v1113
        %1142 = vmatprep.subr.bf16.mxu0 0
        %1143 = vmatpush1.bf16.msra.mxu0 %v1112
        %1144 = vmatprep.subr.bf16.mxu0 0
        %1145 = vmatpush2.bf16.msra.mxu0 0
        %1146 = vmatprep.subr.bf16.mxu0 0
        %1147 = vmatpush2.bf16.msra.mxu0 0
        %1148 = vmatprep.subr.bf16.mxu0 0
        %1149 = vmatpush2.bf16.msra.mxu0 0
        %1150 = vmatprep.subr.bf16.mxu0 0
        %1151 = vmatpush2.bf16.msra.mxu0 0
        %1152 = vmatprep.subr.bf16.mxu0 0
        %1153 = vmatpush2.bf16.msra.mxu0 0
        %1154 = vmatprep.subr.bf16.mxu0 0
        %1155 = vmatpush2.bf16.msra.mxu0 0
        %1156 = vmatprep.subr.bf16.mxu0 0
        %1157 = vmatpush2.bf16.msra.mxu0 0
        %1158 = vmatprep.subr.bf16.mxu0 0
        %1159 = vmatpush2.bf16.msra.mxu0 0
        %1160 = vmatprep.mubr.bf16.mxu0 0
        %1161 = vmatmul.mubr.bf16.gmra.mxu0 %v1056
        %v1162 = vpop.f32.mrf.mxu0
        %v1163 = vadd.f32 0.0, %v1162
        %v1164 = vpop.f32.mrf.mxu0
        %v1165 = vpop.f32.mrf.mxu0
        %v1166 = vadd.f32 0.0, %v1165
        %v1167 = vpop.f32.mrf.mxu0
        %1168 = vmatprep.mubr.bf16.mxu0 0
        %1169 = vmatmul.mubr.bf16.gmra.mxu0 %v1057
        %v1170 = vpop.f32.mrf.mxu0
        %v1171 = vadd.f32 0.0, %v1170
        %v1172 = vpop.f32.mrf.mxu0
        %v1173 = vpop.f32.mrf.mxu0
        %v1174 = vadd.f32 0.0, %v1173
        %v1175 = vpop.f32.mrf.mxu0
        %1176 = vmatprep.mubr.bf16.mxu0 0
        %1177 = vmatmul.mubr.bf16.gmra.mxu0 %v1058
        %v1178 = vpop.f32.mrf.mxu0
        %v1179 = vadd.f32 0.0, %v1178
        %v1180 = vpop.f32.mrf.mxu0
        %v1181 = vpop.f32.mrf.mxu0
        %v1182 = vadd.f32 0.0, %v1181
        %v1183 = vpop.f32.mrf.mxu0
        %1184 = vmatprep.mubr.bf16.mxu0 0
        %1185 = vmatmul.mubr.bf16.gmra.mxu0 %v1059
        %v1186 = vpop.f32.mrf.mxu0
        %v1187 = vadd.f32 0.0, %v1186
        %v1188 = vpop.f32.mrf.mxu0
        %v1189 = vpop.f32.mrf.mxu0
        %v1190 = vadd.f32 0.0, %v1189
        %v1191 = vpop.f32.mrf.mxu0
        %1192 = vmatprep.mubr.bf16.mxu0 0
        %1193 = vmatmul.mubr.bf16.gmra.mxu0 %v1060
        %v1194 = vpop.f32.mrf.mxu0
        %v1195 = vadd.f32 0.0, %v1194
        %v1196 = vpop.f32.mrf.mxu0
        %v1197 = vpop.f32.mrf.mxu0
        %v1198 = vadd.f32 0.0, %v1197
        %v1199 = vpop.f32.mrf.mxu0
        %1200 = vmatprep.mubr.bf16.mxu0 0
        %1201 = vmatmul.mubr.bf16.gmra.mxu0 %v1061
        %v1202 = vpop.f32.mrf.mxu0
        %v1203 = vadd.f32 0.0, %v1202
        %v1204 = vpop.f32.mrf.mxu0
        %v1205 = vpop.f32.mrf.mxu0
        %v1206 = vadd.f32 0.0, %v1205
        %v1207 = vpop.f32.mrf.mxu0
        %1208 = vmatprep.mubr.bf16.mxu0 0
        %1209 = vmatmul.mubr.bf16.gmra.mxu0 %v1062
        %v1210 = vpop.f32.mrf.mxu0
        %v1211 = vadd.f32 0.0, %v1210
        %v1212 = vpop.f32.mrf.mxu0
        %v1213 = vpop.f32.mrf.mxu0
        %v1214 = vadd.f32 0.0, %v1213
        %v1215 = vpop.f32.mrf.mxu0
        %1216 = vmatprep.mubr.bf16.mxu0 0
        %1217 = vmatmul.mubr.bf16.gmra.mxu0 %v1063
        %v1218 = vpop.f32.mrf.mxu0
        %v1219 = vadd.f32 0.0, %v1218
        %v1220 = vpop.f32.mrf.mxu0
        %v1221 = vpop.f32.mrf.mxu0
        %v1222 = vadd.f32 0.0, %v1221
        %v1223 = vpop.f32.mrf.mxu0
        %1224 = vdwg.mxu0
        %1225 = vst [vmem:[%s245] sm:$0xff] %v1163
        %1226 = vst [vmem:[%s245 + $0x8] sm:$0xff] %v1166
        %1227 = vst [vmem:[%s245 + $0x10] sm:$0xff] %v1171
        %1228 = vst [vmem:[%s245 + $0x18] sm:$0xff] %v1174
        %1229 = vst [vmem:[%s245 + $0x20] sm:$0xff] %v1179
        %1230 = vst [vmem:[%s245 + $0x28] sm:$0xff] %v1182
        %1231 = vst [vmem:[%s245 + $0x30] sm:$0xff] %v1187
        %1232 = vst [vmem:[%s245 + $0x38] sm:$0xff] %v1190
        %1233 = vst [vmem:[%s245 + $0x40] sm:$0xff] %v1195
        %1234 = vst [vmem:[%s245 + $0x48] sm:$0xff] %v1198
        %1235 = vst [vmem:[%s245 + $0x50] sm:$0xff] %v1203
        %1236 = vst [vmem:[%s245 + $0x58] sm:$0xff] %v1206
        %1237 = vst [vmem:[%s245 + $0x60] sm:$0xff] %v1211
        %1238 = vst [vmem:[%s245 + $0x68] sm:$0xff] %v1214
        %1239 = vst [vmem:[%s245 + $0x70] sm:$0xff] %v1219
        %1240 = vst [vmem:[%s245 + $0x78] sm:$0xff] %v1222
        %s1241 = sand.u32 %s159, 1
        %s1242 = scalar_lea.sflag [#allocation3], %s1241
        %s1243 = sand.u32 %s159, 1
        %s1244 = smul.addr %s1243, 128
        %s1245 = scalar_lea.vmem [#allocation2], %s1244
        // Predicated region
        $region45: #{tpu_custom_call.1} parent=43 // pred_check
          %p1246 = pneg %p169
        $region46: #{tpu_custom_call.1} parent=43 // pred_check_branch
          %1248 = sbr.rel (%p1246) target = $region48
        $region47: #{tpu_custom_call.1} parent=43 // pred_region
          %s1249 = smul.u32 16, %s20
          %s1251 = ssub.s32 2048, 2048
          %1252 = vsyncadd %s1242, %s1251
          %s1253 = smul.addr %s1249, 128
          %s1254 = scalar_lea.hbm %s6, %s1253
          %s1255 = sshll.u32 %s1245, 4
          %s1256 = int_to_ptr.vmem [resolvable:$true] %s1255
          %1261 = dma.vmem_to_hbm [thread:$0]  %s1256, 2048, %s1254, %s1242, 128, 128, 8
        $region48: #{tpu_custom_call.1} parent=43 // pred_fallthru
          _
      $region44: #{tpu_custom_call.1} parent=5 // pred_fallthru
        _
      %p1262 = scmp.le.s32.totalorder 2, %s15
      // Predicated region
      $region49: #{tpu_custom_call.1} parent=5 // pred_check
        %p1263 = pneg %p1262
      $region50: #{tpu_custom_call.1} parent=5 // pred_check_branch
        %1265 = sbr.rel (%p1263) target = $region52
      $region51: #{tpu_custom_call.1} parent=5 // pred_region
        %s1266 = ssub.s32 %s15, 2
        // Predicated region
        $region53: #{tpu_custom_call.1} parent=51 // pred_check
          %p1267 = pneg %p175
        $region54: #{tpu_custom_call.1} parent=51 // pred_check_branch
          %1269 = sbr.rel (%p1267) target = $region56
        $region55: #{tpu_custom_call.1} parent=51 // pred_region
          %s1270 = sand.u32 %s160, 1
          %s1271 = scalar_lea.sflag [#allocation3], %s1270
          %s1272 = sand.u32 %s160, 1
          %s1273 = smul.addr %s1272, 128
          %s1274 = scalar_lea.vmem [#allocation2], %s1273
          %1275 = dma.done %s1271, 2048
        $region56: #{tpu_custom_call.1} parent=51 // pred_fallthru
          _
      $region52: #{tpu_custom_call.1} parent=5 // pred_fallthru
        _
    $region6: #{tpu_custom_call.1} parent=1 // loop_footer
      %s19 = sadd.s32 1, %s15
    $region7: #{tpu_custom_call.1} parent=1 // loop_footer_branch
      %14 = sbr.rel target = $region3
    $region8: #{tpu_custom_call.1} parent=1 // loop_exit
      _
    %1276 = vsyncpa [#allocation3], 1
    %s1277 = scalar_lea.sflag [#allocation3], 1
    %1278 = vsyncpa %s1277, 1

</llo_original>
